<compile_context>
chip_gen: v7x
topology: tpu7x:2x2x1
jax: 0.10.0
libtpu: 0.0.40
codegen_flags: <defaults>
</compile_context>

<pallas_src>
import functools

import jax
import jax.numpy as jnp
from jax.experimental import pallas as pl
from jax.experimental.pallas import tpu as pltpu

_LANE = 128


def _round_up(x: int, m: int) -> int:
    return (x + m - 1) // m * m


def _linear_kernel(x_ref, wt_ref, b_ref, o_ref):
    # x_ref: [TN, F], wt_ref: [F, A_pad], b_ref: [1, A], o_ref: [TN, A]
    a = o_ref.shape[-1]
    # Full 128-lane MXU matmul; only the store narrows to the real output width.
    acc = jnp.dot(x_ref[...], wt_ref[...], preferred_element_type=jnp.float32)
    o_ref[...] = (acc[:, :a] + b_ref[...]).astype(o_ref.dtype)


@functools.partial(jax.jit, static_argnames=("tile_n",))
def auxiliary_model_forward(features, wt_padded, bias, *, tile_n=512):
    """features: [N, F] f32.
    wt_padded: [F, A_pad] (pre-transposed, zero-padded to a multiple of 128 lanes).
    bias: [1, out_dim] (unpadded — output is stored narrow)."""
    N, F = features.shape
    F_w, A_pad = wt_padded.shape
    assert F == F_w, "feature dim mismatch with weight"
    out_dim = bias.shape[-1]

    # Fixed static row tile; ragged tail handled by the non-divisible grid
    # (OOB reads per-row are don't-care, OOB writes are masked by Pallas).
    tn = tile_n
    grid = (pl.cdiv(N, tn),)

    return pl.pallas_call(
        _linear_kernel,
        out_shape=jax.ShapeDtypeStruct((N, out_dim), features.dtype),
        grid_spec=pl.GridSpec(
            grid=grid,
            in_specs=[
                pl.BlockSpec((tn, F), lambda i: (i, 0)),        # features: tiled over rows
                pl.BlockSpec((F, A_pad), lambda i: (0, 0)),     # weight: VMEM-resident
                pl.BlockSpec((1, out_dim), lambda i: (0, 0)),   # bias:   VMEM-resident
            ],
            # Narrow output block: last dim equals the full array dim, so no lane
            # padding is written to HBM and no post-call slice is needed.
            out_specs=pl.BlockSpec((tn, out_dim), lambda i: (i, 0)),
        ),
        compiler_params=pltpu.CompilerParams(
            dimension_semantics=("parallel",),  # shard row tiles across TCs on v7x
        ),
        cost_estimate=pl.CostEstimate(
            flops=2 * N * F * A_pad,
            transcendentals=0,
            bytes_accessed=4 * (N * F + F * A_pad + out_dim + N * out_dim),
        ),
    )(features, wt_padded, bias)


class AuxiliaryModelJAX:
    """JAX mirror of AuxiliaryModel for the InverseDynamics / TemporalDistance UUIDs.

    Only those branches implement `forward` in the reference PyTorch module; the
    CPCA / CPCASoftMax branches raise NotImplementedError there.
    """

    INVERSE_DYNAMICS_UUID = "InvDyn"
    TEMPORAL_DISTANCE_UUID = "TempDist"

    def __init__(self, aux_uuid, action_dim, obs_embed_dim, belief_dim, key):
        self.aux_uuid = aux_uuid
        self.action_dim = action_dim
        self.obs_embed_dim = obs_embed_dim
        self.belief_dim = belief_dim

        in_dim = 2 * obs_embed_dim + belief_dim
        if aux_uuid == self.INVERSE_DYNAMICS_UUID:
            out_dim = action_dim
        elif aux_uuid == self.TEMPORAL_DISTANCE_UUID:
            out_dim = 1
        else:
            # TODO(synk): CPCA / CPCASoftMax branches have no `forward` in the reference module.
            raise ValueError("Unknown Auxiliary Loss UUID (forward unsupported)")

        kw, kb = jax.random.split(key)
        # Deterministic init matching nn.Linear's uniform(-1/sqrt(in), 1/sqrt(in)) scheme.
        bound = 1.0 / jnp.sqrt(jnp.float32(in_dim))
        self.weight = jax.random.uniform(kw, (out_dim, in_dim), jnp.float32, -bound, bound)
        self.bias = jax.random.uniform(kb, (out_dim,), jnp.float32, -bound, bound)
        self.out_dim = out_dim

        # Pre-transpose + lane-pad the weight once at init: kernel does
        # x[N,F] @ Wt[F,128] on the MXU; only the store narrows to out_dim.
        a_pad = _round_up(out_dim, _LANE)
        self.wt_padded = (
            jnp.zeros((in_dim, a_pad), jnp.float32).at[:, :out_dim].set(self.weight.T)
        )
        self.bias_2d = self.bias.reshape(1, out_dim)

    def __call__(self, features):
        if self.aux_uuid in (self.INVERSE_DYNAMICS_UUID, self.TEMPORAL_DISTANCE_UUID):
            return auxiliary_model_forward(features, self.wt_padded, self.bias_2d)
        raise NotImplementedError(
            f"Auxiliary model with UUID {self.aux_uuid} does not support `forward` call."
        )


if __name__ == "__main__":
    key = jax.random.PRNGKey(0)
    k_param1, k_param2, k_feat1, k_feat2 = jax.random.split(key, 4)

    # Small shapes consistent with the module: obs_embed_dim=32, belief_dim=32, action_dim=6.
    obs_embed_dim = 32
    belief_dim = 32
    action_dim = 6
    in_dim = 2 * obs_embed_dim + belief_dim  # 96

    # --- InverseDynamics branch, batch multiple of 8 ---
    batch1 = 8
    model_inv = AuxiliaryModelJAX(
        AuxiliaryModelJAX.INVERSE_DYNAMICS_UUID,
        action_dim=action_dim,
        obs_embed_dim=obs_embed_dim,
        belief_dim=belief_dim,
        key=k_param1,
    )
    feats1 = jax.random.normal(k_feat1, (batch1, in_dim), jnp.float32)
    out1 = jax.block_until_ready(model_inv(feats1))
    ref1 = feats1 @ model_inv.weight.T + model_inv.bias
    assert out1.shape == (batch1, action_dim)
    assert jnp.allclose(out1, ref1, atol=1e-4, rtol=1e-4)

    # --- TemporalDistance branch, ragged batch (exercises the non-divisible tail block) ---
    batch2 = 13
    model_td = AuxiliaryModelJAX(
        AuxiliaryModelJAX.TEMPORAL_DISTANCE_UUID,
        action_dim=action_dim,
        obs_embed_dim=obs_embed_dim,
        belief_dim=belief_dim,
        key=k_param2,
    )
    feats2 = jax.random.normal(k_feat2, (batch2, in_dim), jnp.float32)
    out2 = jax.block_until_ready(model_td(feats2))
    ref2 = feats2 @ model_td.weight.T + model_td.bias
    assert out2.shape == (batch2, 1)
    assert jnp.allclose(out2, ref2, atol=1e-4, rtol=1e-4)

    # --- Larger batch exercising multiple row tiles + ragged tail ---
    feats3 = jax.random.normal(k_feat1, (1037, in_dim), jnp.float32)
    out3 = jax.block_until_ready(model_inv(feats3))
    ref3 = feats3 @ model_inv.weight.T + model_inv.bias
    assert out3.shape == (1037, action_dim)
    assert jnp.allclose(out3, ref3, atol=1e-4, rtol=1e-4)

    print("KERNEL_OK")
</pallas_src>

<mosaic_0001>
module attributes {stable_mosaic.version = 11 : i64} {
  func.func @_linear_kernel(%arg0: i32, %arg1: memref<512x96xf32, #tpu.memory_space<vmem>>, %arg2: memref<96x128xf32, #tpu.memory_space<vmem>>, %arg3: memref<1x6xf32, #tpu.memory_space<vmem>>, %arg4: memref<512x6xf32, #tpu.memory_space<vmem>>) attributes {dimension_semantics = [#tpu.dimension_semantics<parallel>], iteration_bounds = array<i64: 1>, scalar_prefetch = 0 : i64, scratch_operands = 0 : i64, tpu.core_type = #tpu.core_type<tc>, window_params = [{transform_indices = @transform_0, window_bounds = array<i64: 512, 96>}, {pipeline_mode = #tpu.pipeline_mode<synchronous>, transform_indices = @transform_1, window_bounds = array<i64: 96, 128>}, {pipeline_mode = #tpu.pipeline_mode<synchronous>, transform_indices = @transform_2, window_bounds = array<i64: 1, 6>}, {transform_indices = @transform_3, window_bounds = array<i64: 512, 6>}]} {
    %c0 = arith.constant 0 : index
    %c0_0 = arith.constant 0 : index
    %0 = vector.load %arg1[%c0, %c0_0] : memref<512x96xf32, #tpu.memory_space<vmem>>, vector<512x96xf32>
    %c0_1 = arith.constant 0 : index
    %c0_2 = arith.constant 0 : index
    %1 = vector.load %arg2[%c0_1, %c0_2] : memref<96x128xf32, #tpu.memory_space<vmem>>, vector<96x128xf32>
    %cst = arith.constant dense<0.000000e+00> : vector<512x128xf32>
    %2 = tpu.matmul %0, %1, %cst {dimension_numbers = #tpu.dot_dimension_numbers<[1], [0], [0], [1], [0, 0, 1, 1], [], []>} : vector<512x96xf32>, vector<96x128xf32>, vector<512x128xf32> -> vector<512x128xf32>
    %3 = vector.extract_strided_slice %2 {offsets = [0, 0], sizes = [512, 6], strides = [1, 1]} : vector<512x128xf32> to vector<512x6xf32>
    %c0_3 = arith.constant 0 : index
    %c0_4 = arith.constant 0 : index
    %4 = vector.load %arg3[%c0_3, %c0_4] : memref<1x6xf32, #tpu.memory_space<vmem>>, vector<1x6xf32>
    %5 = vector.broadcast %4 : vector<1x6xf32> to vector<512x6xf32>
    %6 = arith.addf %3, %5 : vector<512x6xf32>
    %c0_5 = arith.constant 0 : index
    %c0_6 = arith.constant 0 : index
    %7 = vector.load %arg4[%c0_5, %c0_6] : memref<512x6xf32, #tpu.memory_space<vmem>>, vector<512x6xf32>
    tpu.vector_store %arg4[%c0_5, %c0_6], %6 {strides = array<i32>} : memref<512x6xf32, #tpu.memory_space<vmem>>, vector<512x6xf32>,
    return
  }
  func.func @transform_0(%arg0: i32) -> (i32, i32) {
    %c0_i32 = arith.constant 0 : i32
    %c0_i32_0 = arith.constant 0 : i32
    return %arg0, %c0_i32 : i32, i32
  }
  func.func @transform_1(%arg0: i32) -> (i32, i32) {
    %c0_i32 = arith.constant 0 : i32
    %c0_i32_0 = arith.constant 0 : i32
    %c0_i32_1 = arith.constant 0 : i32
    return %c0_i32, %c0_i32_0 : i32, i32
  }
  func.func @transform_2(%arg0: i32) -> (i32, i32) {
    %c0_i32 = arith.constant 0 : i32
    %c0_i32_0 = arith.constant 0 : i32
    %c0_i32_1 = arith.constant 0 : i32
    return %c0_i32, %c0_i32_0 : i32, i32
  }
  func.func @transform_3(%arg0: i32) -> (i32, i32) {
    %c0_i32 = arith.constant 0 : i32
    %c0_i32_0 = arith.constant 0 : i32
    return %arg0, %c0_i32 : i32, i32
  }
}

</mosaic_0001>

<llo_original>
// kernel: auxiliary_model_forward.1
$region0: #{auxiliary_model_forward.1}
  #allocation0 [shape = 'u32[]', space=smem, size = 0x4, offset = 0x4, fixed_abs, tag = 'smem constant byte address 0x4 - core index']
  #allocation1 [shape = 'u32[144,128]{1,0:T(1,128)}', space=vmem, size = 0x12000, scoped, tag = 'internal scratch']
  %s0 = inlined_call_operand.hbm [shape: f32[8,96], index: 0, kind: input, shape index: {}]
  %s1 = inlined_call_operand.hbm [shape: f32[96,128], index: 1, kind: input, shape index: {}]
  %s2 = inlined_call_operand.vmem [shape: f32[1,6], index: 2, kind: input, shape index: {}]
  %s3 = inlined_call_operand.hbm [shape: f32[8,6], index: 3, kind: output, shape index: {}]
  %s4 = sld [smem:[#allocation0]]
  $region30: #{auxiliary_model_forward.1} parent=0
    _
  %s6 = ssub.s32 1, %s4
  %s7 = scalar_select 0, %s6, %s4
  $region1: #{auxiliary_model_forward.1} parent=0
    #allocation2 [shape = 'u8[262144]{0}', space=vmem, size = 0x40000, scoped, tag = 'input window, operand 0, single buffered']
    #allocation3 [shape = 's32[1]{0}', space=sflag, size = 0x4, scoped, tag = 'scoped memory for auxiliary_model_forward.1']
    #allocation4 [shape = 's32[1]{0}', space=sflag, size = 0x4, scoped, tag = 'scoped memory for auxiliary_model_forward.1']
    #allocation5 [shape = 'u8[49152]{0}', space=vmem, size = 0xc000, scoped, tag = 'input window, operand 1, single buffered']
    #allocation6 [shape = 's32[1]{0}', space=sflag, size = 0x4, scoped, tag = 'scoped memory for auxiliary_model_forward.1']
    #allocation7 [shape = 'u8[262144]{0}', space=vmem, size = 0x40000, scoped, tag = 'output window, operand 0, single buffered']
    %8 = vsyncpa [#allocation3], 0
    %9 = vsyncpa [#allocation6], 0
    %10 = vsyncpa [#allocation4], 0
    // Predicated region
    $region2: #{auxiliary_model_forward.1} parent=1 // pred_check
      _
    $region3: #{auxiliary_model_forward.1} parent=1 // pred_check_branch
      %12 = sbr.rel (0) target = $region5
    $region4: #{auxiliary_model_forward.1} parent=1 // pred_region
      %s14 = ssub.s32 8192, 128
      %15 = vsyncadd [#allocation3], %s14
      %s16 = sshll.u32 [#allocation2], 4
      %s17 = int_to_ptr.vmem [resolvable:$true] %s16
      %22 = dma.hbm_to_vmem [thread:$0]  %s0, 128, %s17, [#allocation3], 128, 128, 8
    $region5: #{auxiliary_model_forward.1} parent=1 // pred_fallthru
      _
    // Predicated region
    $region6: #{auxiliary_model_forward.1} parent=1 // pred_check
      _
    $region7: #{auxiliary_model_forward.1} parent=1 // pred_check_branch
      %24 = sbr.rel (0) target = $region9
    $region8: #{auxiliary_model_forward.1} parent=1 // pred_region
      %s26 = ssub.s32 1536, 1536
      %27 = vsyncadd [#allocation6], %s26
      %s28 = sshll.u32 [#allocation5], 4
      %s29 = int_to_ptr.vmem [resolvable:$true] %s28
      %34 = dma.hbm_to_vmem [thread:$0]  %s1, 1536, %s29, [#allocation6], 128, 128, 8
    $region9: #{auxiliary_model_forward.1} parent=1 // pred_fallthru
      _
    // Predicated region
    $region10: #{auxiliary_model_forward.1} parent=1 // pred_check
      _
    $region11: #{auxiliary_model_forward.1} parent=1 // pred_check_branch
      %36 = sbr.rel (0) target = $region13
    $region12: #{auxiliary_model_forward.1} parent=1 // pred_region
      _
    $region13: #{auxiliary_model_forward.1} parent=1 // pred_fallthru
      _
    // Predicated region
    $region14: #{auxiliary_model_forward.1} parent=1 // pred_check
      _
    $region15: #{auxiliary_model_forward.1} parent=1 // pred_check_branch
      %38 = sbr.rel (0) target = $region17
    $region16: #{auxiliary_model_forward.1} parent=1 // pred_region
      %39 = dma.done [#allocation3], 8192
    $region17: #{auxiliary_model_forward.1} parent=1 // pred_fallthru
      _
    // Predicated region
    $region18: #{auxiliary_model_forward.1} parent=1 // pred_check
      _
    $region19: #{auxiliary_model_forward.1} parent=1 // pred_check_branch
      %41 = sbr.rel (0) target = $region21
    $region20: #{auxiliary_model_forward.1} parent=1 // pred_region
      %42 = dma.done [#allocation6], 1536
    $region21: #{auxiliary_model_forward.1} parent=1 // pred_fallthru
      _
    %v43 = vld [vmem:[#allocation2] sm:$0xff]
    %v44 = vld [vmem:[#allocation2 + $0x8] sm:$0xff]
    %v45 = vld [vmem:[#allocation2 + $0x10] sm:$0xff]
    %v46 = vld [vmem:[#allocation2 + $0x18] sm:$0xff]
    %v47 = vld [vmem:[#allocation2 + $0x20] sm:$0xff]
    %v48 = vld [vmem:[#allocation2 + $0x28] sm:$0xff]
    %v49 = vld [vmem:[#allocation2 + $0x30] sm:$0xff]
    %v50 = vld [vmem:[#allocation2 + $0x38] sm:$0xff]
    %v51 = vld [vmem:[#allocation2 + $0x40] sm:$0xff]
    %v52 = vld [vmem:[#allocation2 + $0x48] sm:$0xff]
    %v53 = vld [vmem:[#allocation2 + $0x50] sm:$0xff]
    %v54 = vld [vmem:[#allocation2 + $0x58] sm:$0xff]
    %v55 = vld [vmem:[#allocation2 + $0x60] sm:$0xff]
    %v56 = vld [vmem:[#allocation2 + $0x68] sm:$0xff]
    %v57 = vld [vmem:[#allocation2 + $0x70] sm:$0xff]
    %v58 = vld [vmem:[#allocation2 + $0x78] sm:$0xff]
    %v59 = vld [vmem:[#allocation2 + $0x80] sm:$0xff]
    %v60 = vld [vmem:[#allocation2 + $0x88] sm:$0xff]
    %v61 = vld [vmem:[#allocation2 + $0x90] sm:$0xff]
    %v62 = vld [vmem:[#allocation2 + $0x98] sm:$0xff]
    %v63 = vld [vmem:[#allocation2 + $0xa0] sm:$0xff]
    %v64 = vld [vmem:[#allocation2 + $0xa8] sm:$0xff]
    %v65 = vld [vmem:[#allocation2 + $0xb0] sm:$0xff]
    %v66 = vld [vmem:[#allocation2 + $0xb8] sm:$0xff]
    %v67 = vld [vmem:[#allocation2 + $0xc0] sm:$0xff]
    %v68 = vld [vmem:[#allocation2 + $0xc8] sm:$0xff]
    %v69 = vld [vmem:[#allocation2 + $0xd0] sm:$0xff]
    %v70 = vld [vmem:[#allocation2 + $0xd8] sm:$0xff]
    %v71 = vld [vmem:[#allocation2 + $0xe0] sm:$0xff]
    %v72 = vld [vmem:[#allocation2 + $0xe8] sm:$0xff]
    %v73 = vld [vmem:[#allocation2 + $0xf0] sm:$0xff]
    %v74 = vld [vmem:[#allocation2 + $0xf8] sm:$0xff]
    %v75 = vld [vmem:[#allocation2 + $0x100] sm:$0xff]
    %v76 = vld [vmem:[#allocation2 + $0x108] sm:$0xff]
    %v77 = vld [vmem:[#allocation2 + $0x110] sm:$0xff]
    %v78 = vld [vmem:[#allocation2 + $0x118] sm:$0xff]
    %v79 = vld [vmem:[#allocation2 + $0x120] sm:$0xff]
    %v80 = vld [vmem:[#allocation2 + $0x128] sm:$0xff]
    %v81 = vld [vmem:[#allocation2 + $0x130] sm:$0xff]
    %v82 = vld [vmem:[#allocation2 + $0x138] sm:$0xff]
    %v83 = vld [vmem:[#allocation2 + $0x140] sm:$0xff]
    %v84 = vld [vmem:[#allocation2 + $0x148] sm:$0xff]
    %v85 = vld [vmem:[#allocation2 + $0x150] sm:$0xff]
    %v86 = vld [vmem:[#allocation2 + $0x158] sm:$0xff]
    %v87 = vld [vmem:[#allocation2 + $0x160] sm:$0xff]
    %v88 = vld [vmem:[#allocation2 + $0x168] sm:$0xff]
    %v89 = vld [vmem:[#allocation2 + $0x170] sm:$0xff]
    %v90 = vld [vmem:[#allocation2 + $0x178] sm:$0xff]
    %v91 = vld [vmem:[#allocation2 + $0x180] sm:$0xff]
    %v92 = vld [vmem:[#allocation2 + $0x188] sm:$0xff]
    %v93 = vld [vmem:[#allocation2 + $0x190] sm:$0xff]
    %v94 = vld [vmem:[#allocation2 + $0x198] sm:$0xff]
    %v95 = vld [vmem:[#allocation2 + $0x1a0] sm:$0xff]
    %v96 = vld [vmem:[#allocation2 + $0x1a8] sm:$0xff]
    %v97 = vld [vmem:[#allocation2 + $0x1b0] sm:$0xff]
    %v98 = vld [vmem:[#allocation2 + $0x1b8] sm:$0xff]
    %v99 = vld [vmem:[#allocation2 + $0x1c0] sm:$0xff]
    %v100 = vld [vmem:[#allocation2 + $0x1c8] sm:$0xff]
    %v101 = vld [vmem:[#allocation2 + $0x1d0] sm:$0xff]
    %v102 = vld [vmem:[#allocation2 + $0x1d8] sm:$0xff]
    %v103 = vld [vmem:[#allocation2 + $0x1e0] sm:$0xff]
    %v104 = vld [vmem:[#allocation2 + $0x1e8] sm:$0xff]
    %v105 = vld [vmem:[#allocation2 + $0x1f0] sm:$0xff]
    %v106 = vld [vmem:[#allocation2 + $0x1f8] sm:$0xff]
    %v107 = vld [vmem:[#allocation5] sm:$0xff]
    %v108 = vld [vmem:[#allocation5 + $0x8] sm:$0xff]
    %v109 = vld [vmem:[#allocation5 + $0x10] sm:$0xff]
    %v110 = vld [vmem:[#allocation5 + $0x18] sm:$0xff]
    %v111 = vld [vmem:[#allocation5 + $0x20] sm:$0xff]
    %v112 = vld [vmem:[#allocation5 + $0x28] sm:$0xff]
    %v113 = vld [vmem:[#allocation5 + $0x30] sm:$0xff]
    %v114 = vld [vmem:[#allocation5 + $0x38] sm:$0xff]
    %v115 = vld [vmem:[#allocation5 + $0x40] sm:$0xff]
    %v116 = vld [vmem:[#allocation5 + $0x48] sm:$0xff]
    %v117 = vld [vmem:[#allocation5 + $0x50] sm:$0xff]
    %v118 = vld [vmem:[#allocation5 + $0x58] sm:$0xff]
    %vm119 = vcmask 785408
    %v121 = vsel %vm119, %v43, 0
    %v124 = vsel %vm119, %v44, 0
    %v127 = vsel %vm119, %v45, 0
    %v130 = vsel %vm119, %v46, 0
    %v133 = vsel %vm119, %v47, 0
    %v136 = vsel %vm119, %v48, 0
    %v139 = vsel %vm119, %v49, 0
    %v142 = vsel %vm119, %v50, 0
    %v145 = vsel %vm119, %v51, 0
    %v148 = vsel %vm119, %v52, 0
    %v151 = vsel %vm119, %v53, 0
    %v154 = vsel %vm119, %v54, 0
    %v157 = vsel %vm119, %v55, 0
    %v160 = vsel %vm119, %v56, 0
    %v163 = vsel %vm119, %v57, 0
    %v166 = vsel %vm119, %v58, 0
    %v169 = vsel %vm119, %v59, 0
    %v172 = vsel %vm119, %v60, 0
    %v175 = vsel %vm119, %v61, 0
    %v178 = vsel %vm119, %v62, 0
    %v181 = vsel %vm119, %v63, 0
    %v184 = vsel %vm119, %v64, 0
    %v187 = vsel %vm119, %v65, 0
    %v190 = vsel %vm119, %v66, 0
    %v193 = vsel %vm119, %v67, 0
    %v196 = vsel %vm119, %v68, 0
    %v199 = vsel %vm119, %v69, 0
    %v202 = vsel %vm119, %v70, 0
    %v205 = vsel %vm119, %v71, 0
    %v208 = vsel %vm119, %v72, 0
    %v211 = vsel %vm119, %v73, 0
    %v214 = vsel %vm119, %v74, 0
    %v217 = vsel %vm119, %v75, 0
    %v220 = vsel %vm119, %v76, 0
    %v223 = vsel %vm119, %v77, 0
    %v226 = vsel %vm119, %v78, 0
    %v229 = vsel %vm119, %v79, 0
    %v232 = vsel %vm119, %v80, 0
    %v235 = vsel %vm119, %v81, 0
    %v238 = vsel %vm119, %v82, 0
    %v241 = vsel %vm119, %v83, 0
    %v244 = vsel %vm119, %v84, 0
    %v247 = vsel %vm119, %v85, 0
    %v250 = vsel %vm119, %v86, 0
    %v253 = vsel %vm119, %v87, 0
    %v256 = vsel %vm119, %v88, 0
    %v259 = vsel %vm119, %v89, 0
    %v262 = vsel %vm119, %v90, 0
    %v265 = vsel %vm119, %v91, 0
    %v268 = vsel %vm119, %v92, 0
    %v271 = vsel %vm119, %v93, 0
    %v274 = vsel %vm119, %v94, 0
    %v277 = vsel %vm119, %v95, 0
    %v280 = vsel %vm119, %v96, 0
    %v283 = vsel %vm119, %v97, 0
    %v286 = vsel %vm119, %v98, 0
    %v289 = vsel %vm119, %v99, 0
    %v292 = vsel %vm119, %v100, 0
    %v295 = vsel %vm119, %v101, 0
    %v298 = vsel %vm119, %v102, 0
    %v301 = vsel %vm119, %v103, 0
    %v304 = vsel %vm119, %v104, 0
    %v307 = vsel %vm119, %v105, 0
    %v310 = vsel %vm119, %v106, 0
    %312 = vmatprep.subr.mxu0 0.0
    %313 = vmatpush1.msra.mxu0 %v107
    %314 = vmatprep.subr.mxu0 0.0
    %315 = vmatpush1.msra.mxu0 %v108
    %316 = vmatprep.subr.mxu0 0.0
    %317 = vmatpush1.msra.mxu0 %v109
    %318 = vmatprep.subr.mxu0 0.0
    %319 = vmatpush1.msra.mxu0 %v110
    %320 = vmatprep.subr.mxu0 0.0
    %321 = vmatpush1.msra.mxu0 %v111
    %322 = vmatprep.subr.mxu0 0.0
    %323 = vmatpush1.msra.mxu0 %v112
    %324 = vmatprep.subr.mxu0 0.0
    %325 = vmatpush1.msra.mxu0 %v113
    %326 = vmatprep.subr.mxu0 0.0
    %327 = vmatpush1.msra.mxu0 %v114
    %328 = vmatprep.subr.mxu0 0.0
    %329 = vmatpush1.msra.mxu0 %v115
    %330 = vmatprep.subr.mxu0 0.0
    %331 = vmatpush1.msra.mxu0 %v116
    %332 = vmatprep.subr.mxu0 0.0
    %333 = vmatpush1.msra.mxu0 %v117
    %334 = vmatprep.subr.mxu0 0.0
    %335 = vmatpush1.msra.mxu0 %v118
    %336 = vmatprep.subr.mxu0 0.0
    %337 = vmatpush1.msra.mxu0 0.0
    %338 = vmatprep.subr.mxu0 0.0
    %339 = vmatpush1.msra.mxu0 0.0
    %340 = vmatprep.subr.mxu0 0.0
    %341 = vmatpush1.msra.mxu0 0.0
    %342 = vmatprep.subr.mxu0 0.0
    %343 = vmatpush1.msra.mxu0 0.0
    %344 = vmatprep.subr.mxu0 0.0
    %345 = vmatpush1.msra.mxu0 0.0
    %346 = vmatprep.subr.mxu0 0.0
    %347 = vmatpush1.msra.mxu0 0.0
    %348 = vmatprep.subr.mxu0 0.0
    %349 = vmatpush1.msra.mxu0 0.0
    %350 = vmatprep.subr.mxu0 0.0
    %351 = vmatpush1.msra.mxu0 0.0
    %352 = vmatprep.subr.mxu0 0.0
    %353 = vmatpush1.msra.mxu0 0.0
    %354 = vmatprep.subr.mxu0 0.0
    %355 = vmatpush1.msra.mxu0 0.0
    %356 = vmatprep.subr.mxu0 0.0
    %357 = vmatpush1.msra.mxu0 0.0
    %358 = vmatprep.subr.mxu0 0.0
    %359 = vmatpush1.msra.mxu0 0.0
    %360 = vmatprep.subr.mxu0 0.0
    %361 = vmatpush1.msra.mxu0 0.0
    %362 = vmatprep.subr.mxu0 0.0
    %363 = vmatpush1.msra.mxu0 0.0
    %364 = vmatprep.subr.mxu0 0.0
    %365 = vmatpush1.msra.mxu0 0.0
    %366 = vmatprep.subr.mxu0 0.0
    %367 = vmatpush1.msra.mxu0 0.0
    %368 = vmatprep.subr.mxu0 0.0
    %369 = vmatpush1.msra.mxu0 0.0
    %370 = vmatprep.subr.mxu0 0.0
    %371 = vmatpush1.msra.mxu0 0.0
    %372 = vmatprep.subr.mxu0 0.0
    %373 = vmatpush1.msra.mxu0 0.0
    %374 = vmatprep.subr.mxu0 0.0
    %375 = vmatpush1.msra.mxu0 0.0
    %376 = vmatprep.mubr.f32.mxu0 0.0
    %377 = vmatmul.mubr.f32.gmra.mrb[0].mxu0 %v121
    %v378 = vpop.f32.mrb[0].mxu0
    %v379 = vadd.f32 0.0, %v378
    %v380 = vpop.f32.mrb[0].mxu0
    %381 = vmatprep.mubr.f32.mxu0 0.0
    %382 = vmatmul.mubr.f32.gmra.mrb[0].mxu0 %v124
    %v383 = vpop.f32.mrb[0].mxu0
    %v384 = vadd.f32 0.0, %v383
    %v385 = vpop.f32.mrb[0].mxu0
    %386 = vmatprep.mubr.f32.mxu0 0.0
    %387 = vmatmul.mubr.f32.gmra.mrb[0].mxu0 %v127
    %v388 = vpop.f32.mrb[0].mxu0
    %v389 = vadd.f32 0.0, %v388
    %v390 = vpop.f32.mrb[0].mxu0
    %391 = vmatprep.mubr.f32.mxu0 0.0
    %392 = vmatmul.mubr.f32.gmra.mrb[0].mxu0 %v130
    %v393 = vpop.f32.mrb[0].mxu0
    %v394 = vadd.f32 0.0, %v393
    %v395 = vpop.f32.mrb[0].mxu0
    %396 = vmatprep.mubr.f32.mxu0 0.0
    %397 = vmatmul.mubr.f32.gmra.mrb[0].mxu0 %v133
    %v398 = vpop.f32.mrb[0].mxu0
    %v399 = vadd.f32 0.0, %v398
    %v400 = vpop.f32.mrb[0].mxu0
    %401 = vmatprep.mubr.f32.mxu0 0.0
    %402 = vmatmul.mubr.f32.gmra.mrb[0].mxu0 %v136
    %v403 = vpop.f32.mrb[0].mxu0
    %v404 = vadd.f32 0.0, %v403
    %v405 = vpop.f32.mrb[0].mxu0
    %406 = vmatprep.mubr.f32.mxu0 0.0
    %407 = vmatmul.mubr.f32.gmra.mrb[0].mxu0 %v139
    %v408 = vpop.f32.mrb[0].mxu0
    %v409 = vadd.f32 0.0, %v408
    %v410 = vpop.f32.mrb[0].mxu0
    %411 = vmatprep.mubr.f32.mxu0 0.0
    %412 = vmatmul.mubr.f32.gmra.mrb[0].mxu0 %v142
    %v413 = vpop.f32.mrb[0].mxu0
    %v414 = vadd.f32 0.0, %v413
    %v415 = vpop.f32.mrb[0].mxu0
    %416 = vmatprep.mubr.f32.mxu0 0.0
    %417 = vmatmul.mubr.f32.gmra.mrb[0].mxu0 %v145
    %v418 = vpop.f32.mrb[0].mxu0
    %v419 = vadd.f32 0.0, %v418
    %v420 = vpop.f32.mrb[0].mxu0
    %421 = vmatprep.mubr.f32.mxu0 0.0
    %422 = vmatmul.mubr.f32.gmra.mrb[0].mxu0 %v148
    %v423 = vpop.f32.mrb[0].mxu0
    %v424 = vadd.f32 0.0, %v423
    %v425 = vpop.f32.mrb[0].mxu0
    %426 = vmatprep.mubr.f32.mxu0 0.0
    %427 = vmatmul.mubr.f32.gmra.mrb[0].mxu0 %v151
    %v428 = vpop.f32.mrb[0].mxu0
    %v429 = vadd.f32 0.0, %v428
    %v430 = vpop.f32.mrb[0].mxu0
    %431 = vmatprep.mubr.f32.mxu0 0.0
    %432 = vmatmul.mubr.f32.gmra.mrb[0].mxu0 %v154
    %v433 = vpop.f32.mrb[0].mxu0
    %v434 = vadd.f32 0.0, %v433
    %v435 = vpop.f32.mrb[0].mxu0
    %436 = vmatprep.mubr.f32.mxu0 0.0
    %437 = vmatmul.mubr.f32.gmra.mrb[0].mxu0 %v157
    %v438 = vpop.f32.mrb[0].mxu0
    %v439 = vadd.f32 0.0, %v438
    %v440 = vpop.f32.mrb[0].mxu0
    %441 = vmatprep.mubr.f32.mxu0 0.0
    %442 = vmatmul.mubr.f32.gmra.mrb[0].mxu0 %v160
    %v443 = vpop.f32.mrb[0].mxu0
    %v444 = vadd.f32 0.0, %v443
    %v445 = vpop.f32.mrb[0].mxu0
    %446 = vmatprep.mubr.f32.mxu0 0.0
    %447 = vmatmul.mubr.f32.gmra.mrb[0].mxu0 %v163
    %v448 = vpop.f32.mrb[0].mxu0
    %v449 = vadd.f32 0.0, %v448
    %v450 = vpop.f32.mrb[0].mxu0
    %451 = vmatprep.mubr.f32.mxu0 0.0
    %452 = vmatmul.mubr.f32.gmra.mrb[0].mxu0 %v166
    %v453 = vpop.f32.mrb[0].mxu0
    %v454 = vadd.f32 0.0, %v453
    %v455 = vpop.f32.mrb[0].mxu0
    %456 = vmatprep.mubr.f32.mxu0 0.0
    %457 = vmatmul.mubr.f32.gmra.mrb[0].mxu0 %v169
    %v458 = vpop.f32.mrb[0].mxu0
    %v459 = vadd.f32 0.0, %v458
    %v460 = vpop.f32.mrb[0].mxu0
    %461 = vmatprep.mubr.f32.mxu0 0.0
    %462 = vmatmul.mubr.f32.gmra.mrb[0].mxu0 %v172
    %v463 = vpop.f32.mrb[0].mxu0
    %v464 = vadd.f32 0.0, %v463
    %v465 = vpop.f32.mrb[0].mxu0
    %466 = vmatprep.mubr.f32.mxu0 0.0
    %467 = vmatmul.mubr.f32.gmra.mrb[0].mxu0 %v175
    %v468 = vpop.f32.mrb[0].mxu0
    %v469 = vadd.f32 0.0, %v468
    %v470 = vpop.f32.mrb[0].mxu0
    %471 = vmatprep.mubr.f32.mxu0 0.0
    %472 = vmatmul.mubr.f32.gmra.mrb[0].mxu0 %v178
    %v473 = vpop.f32.mrb[0].mxu0
    %v474 = vadd.f32 0.0, %v473
    %v475 = vpop.f32.mrb[0].mxu0
    %476 = vmatprep.mubr.f32.mxu0 0.0
    %477 = vmatmul.mubr.f32.gmra.mrb[0].mxu0 %v181
    %v478 = vpop.f32.mrb[0].mxu0
    %v479 = vadd.f32 0.0, %v478
    %v480 = vpop.f32.mrb[0].mxu0
    %481 = vmatprep.mubr.f32.mxu0 0.0
    %482 = vmatmul.mubr.f32.gmra.mrb[0].mxu0 %v184
    %v483 = vpop.f32.mrb[0].mxu0
    %v484 = vadd.f32 0.0, %v483
    %v485 = vpop.f32.mrb[0].mxu0
    %486 = vmatprep.mubr.f32.mxu0 0.0
    %487 = vmatmul.mubr.f32.gmra.mrb[0].mxu0 %v187
    %v488 = vpop.f32.mrb[0].mxu0
    %v489 = vadd.f32 0.0, %v488
    %v490 = vpop.f32.mrb[0].mxu0
    %491 = vmatprep.mubr.f32.mxu0 0.0
    %492 = vmatmul.mubr.f32.gmra.mrb[0].mxu0 %v190
    %v493 = vpop.f32.mrb[0].mxu0
    %v494 = vadd.f32 0.0, %v493
    %v495 = vpop.f32.mrb[0].mxu0
    %496 = vmatprep.mubr.f32.mxu0 0.0
    %497 = vmatmul.mubr.f32.gmra.mrb[0].mxu0 %v193
    %v498 = vpop.f32.mrb[0].mxu0
    %v499 = vadd.f32 0.0, %v498
    %v500 = vpop.f32.mrb[0].mxu0
    %501 = vmatprep.mubr.f32.mxu0 0.0
    %502 = vmatmul.mubr.f32.gmra.mrb[0].mxu0 %v196
    %v503 = vpop.f32.mrb[0].mxu0
    %v504 = vadd.f32 0.0, %v503
    %v505 = vpop.f32.mrb[0].mxu0
    %506 = vmatprep.mubr.f32.mxu0 0.0
    %507 = vmatmul.mubr.f32.gmra.mrb[0].mxu0 %v199
    %v508 = vpop.f32.mrb[0].mxu0
    %v509 = vadd.f32 0.0, %v508
    %v510 = vpop.f32.mrb[0].mxu0
    %511 = vmatprep.mubr.f32.mxu0 0.0
    %512 = vmatmul.mubr.f32.gmra.mrb[0].mxu0 %v202
    %v513 = vpop.f32.mrb[0].mxu0
    %v514 = vadd.f32 0.0, %v513
    %v515 = vpop.f32.mrb[0].mxu0
    %516 = vmatprep.mubr.f32.mxu0 0.0
    %517 = vmatmul.mubr.f32.gmra.mrb[0].mxu0 %v205
    %v518 = vpop.f32.mrb[0].mxu0
    %v519 = vadd.f32 0.0, %v518
    %v520 = vpop.f32.mrb[0].mxu0
    %521 = vmatprep.mubr.f32.mxu0 0.0
    %522 = vmatmul.mubr.f32.gmra.mrb[0].mxu0 %v208
    %v523 = vpop.f32.mrb[0].mxu0
    %v524 = vadd.f32 0.0, %v523
    %v525 = vpop.f32.mrb[0].mxu0
    %526 = vmatprep.mubr.f32.mxu0 0.0
    %527 = vmatmul.mubr.f32.gmra.mrb[0].mxu0 %v211
    %v528 = vpop.f32.mrb[0].mxu0
    %v529 = vadd.f32 0.0, %v528
    %v530 = vpop.f32.mrb[0].mxu0
    %531 = vmatprep.mubr.f32.mxu0 0.0
    %532 = vmatmul.mubr.f32.gmra.mrb[0].mxu0 %v214
    %v533 = vpop.f32.mrb[0].mxu0
    %v534 = vadd.f32 0.0, %v533
    %v535 = vpop.f32.mrb[0].mxu0
    %536 = vmatprep.mubr.f32.mxu0 0.0
    %537 = vmatmul.mubr.f32.gmra.mrb[0].mxu0 %v217
    %v538 = vpop.f32.mrb[0].mxu0
    %v539 = vadd.f32 0.0, %v538
    %v540 = vpop.f32.mrb[0].mxu0
    %541 = vmatprep.mubr.f32.mxu0 0.0
    %542 = vmatmul.mubr.f32.gmra.mrb[0].mxu0 %v220
    %v543 = vpop.f32.mrb[0].mxu0
    %v544 = vadd.f32 0.0, %v543
    %v545 = vpop.f32.mrb[0].mxu0
    %546 = vmatprep.mubr.f32.mxu0 0.0
    %547 = vmatmul.mubr.f32.gmra.mrb[0].mxu0 %v223
    %v548 = vpop.f32.mrb[0].mxu0
    %v549 = vadd.f32 0.0, %v548
    %v550 = vpop.f32.mrb[0].mxu0
    %551 = vmatprep.mubr.f32.mxu0 0.0
    %552 = vmatmul.mubr.f32.gmra.mrb[0].mxu0 %v226
    %v553 = vpop.f32.mrb[0].mxu0
    %v554 = vadd.f32 0.0, %v553
    %v555 = vpop.f32.mrb[0].mxu0
    %556 = vmatprep.mubr.f32.mxu0 0.0
    %557 = vmatmul.mubr.f32.gmra.mrb[0].mxu0 %v229
    %v558 = vpop.f32.mrb[0].mxu0
    %v559 = vadd.f32 0.0, %v558
    %v560 = vpop.f32.mrb[0].mxu0
    %561 = vmatprep.mubr.f32.mxu0 0.0
    %562 = vmatmul.mubr.f32.gmra.mrb[0].mxu0 %v232
    %v563 = vpop.f32.mrb[0].mxu0
    %v564 = vadd.f32 0.0, %v563
    %v565 = vpop.f32.mrb[0].mxu0
    %566 = vmatprep.mubr.f32.mxu0 0.0
    %567 = vmatmul.mubr.f32.gmra.mrb[0].mxu0 %v235
    %v568 = vpop.f32.mrb[0].mxu0
    %v569 = vadd.f32 0.0, %v568
    %v570 = vpop.f32.mrb[0].mxu0
    %571 = vmatprep.mubr.f32.mxu0 0.0
    %572 = vmatmul.mubr.f32.gmra.mrb[0].mxu0 %v238
    %v573 = vpop.f32.mrb[0].mxu0
    %v574 = vadd.f32 0.0, %v573
    %v575 = vpop.f32.mrb[0].mxu0
    %576 = vmatprep.mubr.f32.mxu0 0.0
    %577 = vmatmul.mubr.f32.gmra.mrb[0].mxu0 %v241
    %v578 = vpop.f32.mrb[0].mxu0
    %v579 = vadd.f32 0.0, %v578
    %v580 = vpop.f32.mrb[0].mxu0
    %581 = vmatprep.mubr.f32.mxu0 0.0
    %582 = vmatmul.mubr.f32.gmra.mrb[0].mxu0 %v244
    %v583 = vpop.f32.mrb[0].mxu0
    %v584 = vadd.f32 0.0, %v583
    %v585 = vpop.f32.mrb[0].mxu0
    %586 = vmatprep.mubr.f32.mxu0 0.0
    %587 = vmatmul.mubr.f32.gmra.mrb[0].mxu0 %v247
    %v588 = vpop.f32.mrb[0].mxu0
    %v589 = vadd.f32 0.0, %v588
    %v590 = vpop.f32.mrb[0].mxu0
    %591 = vmatprep.mubr.f32.mxu0 0.0
    %592 = vmatmul.mubr.f32.gmra.mrb[0].mxu0 %v250
    %v593 = vpop.f32.mrb[0].mxu0
    %v594 = vadd.f32 0.0, %v593
    %v595 = vpop.f32.mrb[0].mxu0
    %596 = vmatprep.mubr.f32.mxu0 0.0
    %597 = vmatmul.mubr.f32.gmra.mrb[0].mxu0 %v253
    %v598 = vpop.f32.mrb[0].mxu0
    %v599 = vadd.f32 0.0, %v598
    %v600 = vpop.f32.mrb[0].mxu0
    %601 = vmatprep.mubr.f32.mxu0 0.0
    %602 = vmatmul.mubr.f32.gmra.mrb[0].mxu0 %v256
    %v603 = vpop.f32.mrb[0].mxu0
    %v604 = vadd.f32 0.0, %v603
    %v605 = vpop.f32.mrb[0].mxu0
    %606 = vmatprep.mubr.f32.mxu0 0.0
    %607 = vmatmul.mubr.f32.gmra.mrb[0].mxu0 %v259
    %v608 = vpop.f32.mrb[0].mxu0
    %v609 = vadd.f32 0.0, %v608
    %v610 = vpop.f32.mrb[0].mxu0
    %611 = vmatprep.mubr.f32.mxu0 0.0
    %612 = vmatmul.mubr.f32.gmra.mrb[0].mxu0 %v262
    %v613 = vpop.f32.mrb[0].mxu0
    %v614 = vadd.f32 0.0, %v613
    %v615 = vpop.f32.mrb[0].mxu0
    %616 = vmatprep.mubr.f32.mxu0 0.0
    %617 = vmatmul.mubr.f32.gmra.mrb[0].mxu0 %v265
    %v618 = vpop.f32.mrb[0].mxu0
    %v619 = vadd.f32 0.0, %v618
    %v620 = vpop.f32.mrb[0].mxu0
    %621 = vmatprep.mubr.f32.mxu0 0.0
    %622 = vmatmul.mubr.f32.gmra.mrb[0].mxu0 %v268
    %v623 = vpop.f32.mrb[0].mxu0
    %v624 = vadd.f32 0.0, %v623
    %v625 = vpop.f32.mrb[0].mxu0
    %626 = vmatprep.mubr.f32.mxu0 0.0
    %627 = vmatmul.mubr.f32.gmra.mrb[0].mxu0 %v271
    %v628 = vpop.f32.mrb[0].mxu0
    %v629 = vadd.f32 0.0, %v628
    %v630 = vpop.f32.mrb[0].mxu0
    %631 = vmatprep.mubr.f32.mxu0 0.0
    %632 = vmatmul.mubr.f32.gmra.mrb[0].mxu0 %v274
    %v633 = vpop.f32.mrb[0].mxu0
    %v634 = vadd.f32 0.0, %v633
    %v635 = vpop.f32.mrb[0].mxu0
    %636 = vmatprep.mubr.f32.mxu0 0.0
    %637 = vmatmul.mubr.f32.gmra.mrb[0].mxu0 %v277
    %v638 = vpop.f32.mrb[0].mxu0
    %v639 = vadd.f32 0.0, %v638
    %v640 = vpop.f32.mrb[0].mxu0
    %641 = vmatprep.mubr.f32.mxu0 0.0
    %642 = vmatmul.mubr.f32.gmra.mrb[0].mxu0 %v280
    %v643 = vpop.f32.mrb[0].mxu0
    %v644 = vadd.f32 0.0, %v643
    %v645 = vpop.f32.mrb[0].mxu0
    %646 = vmatprep.mubr.f32.mxu0 0.0
    %647 = vmatmul.mubr.f32.gmra.mrb[0].mxu0 %v283
    %v648 = vpop.f32.mrb[0].mxu0
    %v649 = vadd.f32 0.0, %v648
    %v650 = vpop.f32.mrb[0].mxu0
    %651 = vmatprep.mubr.f32.mxu0 0.0
    %652 = vmatmul.mubr.f32.gmra.mrb[0].mxu0 %v286
    %v653 = vpop.f32.mrb[0].mxu0
    %v654 = vadd.f32 0.0, %v653
    %v655 = vpop.f32.mrb[0].mxu0
    %656 = vmatprep.mubr.f32.mxu0 0.0
    %657 = vmatmul.mubr.f32.gmra.mrb[0].mxu0 %v289
    %v658 = vpop.f32.mrb[0].mxu0
    %v659 = vadd.f32 0.0, %v658
    %v660 = vpop.f32.mrb[0].mxu0
    %661 = vmatprep.mubr.f32.mxu0 0.0
    %662 = vmatmul.mubr.f32.gmra.mrb[0].mxu0 %v292
    %v663 = vpop.f32.mrb[0].mxu0
    %v664 = vadd.f32 0.0, %v663
    %v665 = vpop.f32.mrb[0].mxu0
    %666 = vmatprep.mubr.f32.mxu0 0.0
    %667 = vmatmul.mubr.f32.gmra.mrb[0].mxu0 %v295
    %v668 = vpop.f32.mrb[0].mxu0
    %v669 = vadd.f32 0.0, %v668
    %v670 = vpop.f32.mrb[0].mxu0
    %671 = vmatprep.mubr.f32.mxu0 0.0
    %672 = vmatmul.mubr.f32.gmra.mrb[0].mxu0 %v298
    %v673 = vpop.f32.mrb[0].mxu0
    %v674 = vadd.f32 0.0, %v673
    %v675 = vpop.f32.mrb[0].mxu0
    %676 = vmatprep.mubr.f32.mxu0 0.0
    %677 = vmatmul.mubr.f32.gmra.mrb[0].mxu0 %v301
    %v678 = vpop.f32.mrb[0].mxu0
    %v679 = vadd.f32 0.0, %v678
    %v680 = vpop.f32.mrb[0].mxu0
    %681 = vmatprep.mubr.f32.mxu0 0.0
    %682 = vmatmul.mubr.f32.gmra.mrb[0].mxu0 %v304
    %v683 = vpop.f32.mrb[0].mxu0
    %v684 = vadd.f32 0.0, %v683
    %v685 = vpop.f32.mrb[0].mxu0
    %686 = vmatprep.mubr.f32.mxu0 0.0
    %687 = vmatmul.mubr.f32.gmra.mrb[0].mxu0 %v307
    %v688 = vpop.f32.mrb[0].mxu0
    %v689 = vadd.f32 0.0, %v688
    %v690 = vpop.f32.mrb[0].mxu0
    %691 = vmatprep.mubr.f32.mxu0 0.0
    %692 = vmatmul.mubr.f32.gmra.mrb[0].mxu0 %v310
    %v693 = vpop.f32.mrb[0].mxu0
    %v694 = vadd.f32 0.0, %v693
    %v695 = vpop.f32.mrb[0].mxu0
    %696 = vdwg.mxu0
    %v697 = vld [vmem:[%s2] sm:$0x1]
    %v699 = vlaneseq
    %v700 = vshrl.u32 %v699, 7
    %v701 = vsub.s32 0, %v700
    %v702 = vrot.slane %v697, %v701
    %v704 = vadd.f32 %v379, %v702
    %v705 = vadd.f32 %v384, %v702
    %v706 = vadd.f32 %v389, %v702
    %v707 = vadd.f32 %v394, %v702
    %v708 = vadd.f32 %v399, %v702
    %v709 = vadd.f32 %v404, %v702
    %v710 = vadd.f32 %v409, %v702
    %v711 = vadd.f32 %v414, %v702
    %v712 = vadd.f32 %v419, %v702
    %v713 = vadd.f32 %v424, %v702
    %v714 = vadd.f32 %v429, %v702
    %v715 = vadd.f32 %v434, %v702
    %v716 = vadd.f32 %v439, %v702
    %v717 = vadd.f32 %v444, %v702
    %v718 = vadd.f32 %v449, %v702
    %v719 = vadd.f32 %v454, %v702
    %v720 = vadd.f32 %v459, %v702
    %v721 = vadd.f32 %v464, %v702
    %v722 = vadd.f32 %v469, %v702
    %v723 = vadd.f32 %v474, %v702
    %v724 = vadd.f32 %v479, %v702
    %v725 = vadd.f32 %v484, %v702
    %v726 = vadd.f32 %v489, %v702
    %v727 = vadd.f32 %v494, %v702
    %v728 = vadd.f32 %v499, %v702
    %v729 = vadd.f32 %v504, %v702
    %v730 = vadd.f32 %v509, %v702
    %v731 = vadd.f32 %v514, %v702
    %v732 = vadd.f32 %v519, %v702
    %v733 = vadd.f32 %v524, %v702
    %v734 = vadd.f32 %v529, %v702
    %v735 = vadd.f32 %v534, %v702
    %v736 = vadd.f32 %v539, %v702
    %v737 = vadd.f32 %v544, %v702
    %v738 = vadd.f32 %v549, %v702
    %v739 = vadd.f32 %v554, %v702
    %v740 = vadd.f32 %v559, %v702
    %v741 = vadd.f32 %v564, %v702
    %v742 = vadd.f32 %v569, %v702
    %v743 = vadd.f32 %v574, %v702
    %v744 = vadd.f32 %v579, %v702
    %v745 = vadd.f32 %v584, %v702
    %v746 = vadd.f32 %v589, %v702
    %v747 = vadd.f32 %v594, %v702
    %v748 = vadd.f32 %v599, %v702
    %v749 = vadd.f32 %v604, %v702
    %v750 = vadd.f32 %v609, %v702
    %v751 = vadd.f32 %v614, %v702
    %v752 = vadd.f32 %v619, %v702
    %v753 = vadd.f32 %v624, %v702
    %v754 = vadd.f32 %v629, %v702
    %v755 = vadd.f32 %v634, %v702
    %v756 = vadd.f32 %v639, %v702
    %v757 = vadd.f32 %v644, %v702
    %v758 = vadd.f32 %v649, %v702
    %v759 = vadd.f32 %v654, %v702
    %v760 = vadd.f32 %v659, %v702
    %v761 = vadd.f32 %v664, %v702
    %v762 = vadd.f32 %v669, %v702
    %v763 = vadd.f32 %v674, %v702
    %v764 = vadd.f32 %v679, %v702
    %v765 = vadd.f32 %v684, %v702
    %v766 = vadd.f32 %v689, %v702
    %v767 = vadd.f32 %v694, %v702
    %vm768 = vcmask 48128
    %769 = vst.msk [vmem:[#allocation7] sm:$0xff] %vm768, %v704
    %770 = vst.msk [vmem:[#allocation7 + $0x8] sm:$0xff] %vm768, %v705
    %771 = vst.msk [vmem:[#allocation7 + $0x10] sm:$0xff] %vm768, %v706
    %772 = vst.msk [vmem:[#allocation7 + $0x18] sm:$0xff] %vm768, %v707
    %773 = vst.msk [vmem:[#allocation7 + $0x20] sm:$0xff] %vm768, %v708
    %774 = vst.msk [vmem:[#allocation7 + $0x28] sm:$0xff] %vm768, %v709
    %775 = vst.msk [vmem:[#allocation7 + $0x30] sm:$0xff] %vm768, %v710
    %776 = vst.msk [vmem:[#allocation7 + $0x38] sm:$0xff] %vm768, %v711
    %777 = vst.msk [vmem:[#allocation7 + $0x40] sm:$0xff] %vm768, %v712
    %778 = vst.msk [vmem:[#allocation7 + $0x48] sm:$0xff] %vm768, %v713
    %779 = vst.msk [vmem:[#allocation7 + $0x50] sm:$0xff] %vm768, %v714
    %780 = vst.msk [vmem:[#allocation7 + $0x58] sm:$0xff] %vm768, %v715
    %781 = vst.msk [vmem:[#allocation7 + $0x60] sm:$0xff] %vm768, %v716
    %782 = vst.msk [vmem:[#allocation7 + $0x68] sm:$0xff] %vm768, %v717
    %783 = vst.msk [vmem:[#allocation7 + $0x70] sm:$0xff] %vm768, %v718
    %784 = vst.msk [vmem:[#allocation7 + $0x78] sm:$0xff] %vm768, %v719
    %785 = vst.msk [vmem:[#allocation7 + $0x80] sm:$0xff] %vm768, %v720
    %786 = vst.msk [vmem:[#allocation7 + $0x88] sm:$0xff] %vm768, %v721
    %787 = vst.msk [vmem:[#allocation7 + $0x90] sm:$0xff] %vm768, %v722
    %788 = vst.msk [vmem:[#allocation7 + $0x98] sm:$0xff] %vm768, %v723
    %789 = vst.msk [vmem:[#allocation7 + $0xa0] sm:$0xff] %vm768, %v724
    %790 = vst.msk [vmem:[#allocation7 + $0xa8] sm:$0xff] %vm768, %v725
    %791 = vst.msk [vmem:[#allocation7 + $0xb0] sm:$0xff] %vm768, %v726
    %792 = vst.msk [vmem:[#allocation7 + $0xb8] sm:$0xff] %vm768, %v727
    %793 = vst.msk [vmem:[#allocation7 + $0xc0] sm:$0xff] %vm768, %v728
    %794 = vst.msk [vmem:[#allocation7 + $0xc8] sm:$0xff] %vm768, %v729
    %795 = vst.msk [vmem:[#allocation7 + $0xd0] sm:$0xff] %vm768, %v730
    %796 = vst.msk [vmem:[#allocation7 + $0xd8] sm:$0xff] %vm768, %v731
    %797 = vst.msk [vmem:[#allocation7 + $0xe0] sm:$0xff] %vm768, %v732
    %798 = vst.msk [vmem:[#allocation7 + $0xe8] sm:$0xff] %vm768, %v733
    %799 = vst.msk [vmem:[#allocation7 + $0xf0] sm:$0xff] %vm768, %v734
    %800 = vst.msk [vmem:[#allocation7 + $0xf8] sm:$0xff] %vm768, %v735
    %801 = vst.msk [vmem:[#allocation7 + $0x100] sm:$0xff] %vm768, %v736
    %802 = vst.msk [vmem:[#allocation7 + $0x108] sm:$0xff] %vm768, %v737
    %803 = vst.msk [vmem:[#allocation7 + $0x110] sm:$0xff] %vm768, %v738
    %804 = vst.msk [vmem:[#allocation7 + $0x118] sm:$0xff] %vm768, %v739
    %805 = vst.msk [vmem:[#allocation7 + $0x120] sm:$0xff] %vm768, %v740
    %806 = vst.msk [vmem:[#allocation7 + $0x128] sm:$0xff] %vm768, %v741
    %807 = vst.msk [vmem:[#allocation7 + $0x130] sm:$0xff] %vm768, %v742
    %808 = vst.msk [vmem:[#allocation7 + $0x138] sm:$0xff] %vm768, %v743
    %809 = vst.msk [vmem:[#allocation7 + $0x140] sm:$0xff] %vm768, %v744
    %810 = vst.msk [vmem:[#allocation7 + $0x148] sm:$0xff] %vm768, %v745
    %811 = vst.msk [vmem:[#allocation7 + $0x150] sm:$0xff] %vm768, %v746
    %812 = vst.msk [vmem:[#allocation7 + $0x158] sm:$0xff] %vm768, %v747
    %813 = vst.msk [vmem:[#allocation7 + $0x160] sm:$0xff] %vm768, %v748
    %814 = vst.msk [vmem:[#allocation7 + $0x168] sm:$0xff] %vm768, %v749
    %815 = vst.msk [vmem:[#allocation7 + $0x170] sm:$0xff] %vm768, %v750
    %816 = vst.msk [vmem:[#allocation7 + $0x178] sm:$0xff] %vm768, %v751
    %817 = vst.msk [vmem:[#allocation7 + $0x180] sm:$0xff] %vm768, %v752
    %818 = vst.msk [vmem:[#allocation7 + $0x188] sm:$0xff] %vm768, %v753
    %819 = vst.msk [vmem:[#allocation7 + $0x190] sm:$0xff] %vm768, %v754
    %820 = vst.msk [vmem:[#allocation7 + $0x198] sm:$0xff] %vm768, %v755
    %821 = vst.msk [vmem:[#allocation7 + $0x1a0] sm:$0xff] %vm768, %v756
    %822 = vst.msk [vmem:[#allocation7 + $0x1a8] sm:$0xff] %vm768, %v757
    %823 = vst.msk [vmem:[#allocation7 + $0x1b0] sm:$0xff] %vm768, %v758
    %824 = vst.msk [vmem:[#allocation7 + $0x1b8] sm:$0xff] %vm768, %v759
    %825 = vst.msk [vmem:[#allocation7 + $0x1c0] sm:$0xff] %vm768, %v760
    %826 = vst.msk [vmem:[#allocation7 + $0x1c8] sm:$0xff] %vm768, %v761
    %827 = vst.msk [vmem:[#allocation7 + $0x1d0] sm:$0xff] %vm768, %v762
    %828 = vst.msk [vmem:[#allocation7 + $0x1d8] sm:$0xff] %vm768, %v763
    %829 = vst.msk [vmem:[#allocation7 + $0x1e0] sm:$0xff] %vm768, %v764
    %830 = vst.msk [vmem:[#allocation7 + $0x1e8] sm:$0xff] %vm768, %v765
    %831 = vst.msk [vmem:[#allocation7 + $0x1f0] sm:$0xff] %vm768, %v766
    %832 = vst.msk [vmem:[#allocation7 + $0x1f8] sm:$0xff] %vm768, %v767
    // Predicated region
    $region22: #{auxiliary_model_forward.1} parent=1 // pred_check
      _
    $region23: #{auxiliary_model_forward.1} parent=1 // pred_check_branch
      %834 = sbr.rel (0) target = $region25
    $region24: #{auxiliary_model_forward.1} parent=1 // pred_region
      %s836 = ssub.s32 8192, 128
      %837 = vsyncadd [#allocation4], %s836
      %s838 = sshll.u32 [#allocation7], 4
      %s839 = int_to_ptr.vmem [resolvable:$true] %s838
      %844 = dma.vmem_to_hbm [thread:$0]  %s839, 128, %s3, [#allocation4], 128, 128, 8
    $region25: #{auxiliary_model_forward.1} parent=1 // pred_fallthru
      _
    // Predicated region
    $region26: #{auxiliary_model_forward.1} parent=1 // pred_check
      _
    $region27: #{auxiliary_model_forward.1} parent=1 // pred_check_branch
      %846 = sbr.rel (0) target = $region29
    $region28: #{auxiliary_model_forward.1} parent=1 // pred_region
      %847 = dma.done [#allocation4], 8192
    $region29: #{auxiliary_model_forward.1} parent=1 // pred_fallthru
      _
    %848 = vsyncpa [#allocation3], 1
    %849 = vsyncpa [#allocation6], 1
    %850 = vsyncpa [#allocation4], 1

</llo_original>
